<compile_context>
chip_gen: v7x
topology: tpu7x:2x2x1
jax: 0.10.0
libtpu: 0.0.40
codegen_flags: <defaults>
</compile_context>

<pallas_src>
import math

import jax
import jax.numpy as jnp
from jax import lax
from jax.experimental import pallas as pl
from jax.experimental.pallas import tpu as pltpu


def _round_up(x, m):
    return ((x + m - 1) // m) * m


def _xt_dot(x, w):
    # x: (tile_m, tile_k), w: (tile_n, tile_k) -> (tile_m, tile_n), f32 accum.
    # Contracting the last dim of both operands keeps the weight in its native
    # (N, K) layout (no wrapper-side transpose); the MXU handles this natively.
    return lax.dot_general(
        x, w,
        dimension_numbers=(((1,), (1,)), ((), ())),
        preferred_element_type=jnp.float32,
    )


# --- kernels ---------------------------------------------------------------

def _kacc_bias_kernel(x_ref, w_ref, b_ref, o_ref, acc_ref):
    """Grid (i, j, k): accumulate over K tiles; bias folded into k==0 init."""
    k = pl.program_id(2)
    part = _xt_dot(x_ref[...], w_ref[...])

    @pl.when(k == 0)
    def _():
        acc_ref[...] = part + b_ref[...]

    @pl.when(k != 0)
    def _():
        acc_ref[...] = acc_ref[...] + part

    @pl.when(k == pl.num_programs(2) - 1)
    def _():
        # Emulated reduce_from_model_parallel_region complete.
        o_ref[...] = acc_ref[...].astype(o_ref.dtype)


def _kacc_nobias_kernel(x_ref, w_ref, o_ref, acc_ref):
    k = pl.program_id(2)
    part = _xt_dot(x_ref[...], w_ref[...])

    @pl.when(k == 0)
    def _():
        acc_ref[...] = part

    @pl.when(k != 0)
    def _():
        acc_ref[...] = acc_ref[...] + part

    @pl.when(k == pl.num_programs(2) - 1)
    def _():
        o_ref[...] = acc_ref[...].astype(o_ref.dtype)


def _single_bias_kernel(x_ref, w_ref, b_ref, o_ref):
    """Single K step: no accumulator scratch, no predication."""
    o_ref[...] = (_xt_dot(x_ref[...], w_ref[...]) + b_ref[...]).astype(o_ref.dtype)


def _single_nobias_kernel(x_ref, w_ref, o_ref):
    o_ref[...] = _xt_dot(x_ref[...], w_ref[...]).astype(o_ref.dtype)


# --- wrapper ---------------------------------------------------------------

def _vmem_capacity_bytes():
    try:
        info = pltpu.get_tpu_info()
        cap = getattr(info, "vmem_capacity_bytes", None)
        if cap:
            return int(cap)
    except Exception:
        pass
    return 64 << 20  # conservative (v7x-sized) fallback


def _balanced_tile(dim, cap, align):
    """~Equal splits of `dim` into tiles <= cap, aligned; bounds padding."""
    dim = max(int(dim), 1)
    if dim <= cap:
        return _round_up(dim, align)
    n_tiles = -(-dim // cap)
    return _round_up(-(-dim // n_tiles), align)


def row_parallel_linear(x, weight, bias=None, *, tile_m=None, tile_n=None,
                        tile_k=None):
    """Pallas implementation of RowParallelLinear.forward (world_size == 1).

    x:      (..., in_features)
    weight: (out_features, in_features)   -- exactly like the nn.Parameter
    bias:   (out_features,) or None
    returns (..., out_features)
    """
    out_features, in_features = weight.shape
    lead_shape = x.shape[:-1]
    m = int(math.prod(lead_shape)) if lead_shape else 1

    out_dtype = x.dtype
    x_item = jnp.dtype(x.dtype).itemsize
    w_item = jnp.dtype(weight.dtype).itemsize
    o_item = jnp.dtype(out_dtype).itemsize
    # Sublane packing minimum: 8 rows (f32), 16 (bf16), 32 (int8/fp8).
    sublane_min = max(8, 32 // max(x_item, 1))

    # --- Generation-aware VMEM budget -------------------------------------
    vmem_cap = _vmem_capacity_bytes()
    # Usable budget for the kernel's buffers: ~56 MiB on v7x (64 MiB VMEM),
    # ~112 MiB on v5e/v6e (128 MiB VMEM).
    vmem_budget = vmem_cap - max(8 << 20, vmem_cap // 8)
    big_vmem = vmem_budget >= (96 << 20)

    cap_m = 1024 if big_vmem else 512
    cap_n = 1024
    cap_k = 2048

    # --- Tile selection (balanced splits, MXU-sized, VMEM-bounded) --------
    if tile_m is None:
        tile_m = _balanced_tile(m, cap_m, sublane_min)
    else:
        tile_m = _round_up(int(tile_m), sublane_min)
    if tile_n is None:
        tile_n = _balanced_tile(out_features, cap_n, 128)
    else:
        tile_n = _round_up(int(tile_n), 128)
    if tile_k is None:
        tile_k = _balanced_tile(in_features, cap_k, 128)
    else:
        tile_k = _round_up(int(tile_k), 128)

    has_bias = bias is not None

    def footprint(tm, tn, tk):
        f = 2 * tm * tk * x_item        # X tile (double-buffered)
        f += 2 * tn * tk * w_item       # W tile (double-buffered)
        f += 2 * tm * tn * o_item       # output tile (double-buffered)
        f += tm * tn * 4                # f32 accumulator scratch
        if has_bias:
            f += 2 * tn * 4
        return f

    # Shrink (K first, then N, then M) until double-buffered tiles fit VMEM.
    while footprint(tile_m, tile_n, tile_k) > vmem_budget:
        if tile_k >= 512:
            tile_k = _round_up(tile_k // 2, 128)
        elif tile_n >= 256:
            tile_n = _round_up(tile_n // 2, 128)
        elif tile_m >= 2 * sublane_min:
            tile_m = _round_up(tile_m // 2, sublane_min)
        else:
            break

    # Guarantee >= 2 "parallel" output blocks when possible so both v7x
    # TensorCores get work on decode-style small-M / small-N calls.
    gm = _round_up(m, tile_m) // tile_m
    gn = _round_up(out_features, tile_n) // tile_n
    if gm * gn < 2:
        if tile_n >= 256:
            tile_n = _round_up(tile_n // 2, 128)
        elif tile_m > sublane_min and m > sublane_min:
            tile_m = max(sublane_min, _round_up(tile_m // 2, sublane_min))

    m_pad = _round_up(m, tile_m)
    n_pad = _round_up(out_features, tile_n)
    k_pad = _round_up(in_features, tile_k)
    grid_m = m_pad // tile_m
    grid_n = n_pad // tile_n
    grid_k = k_pad // tile_k

    # --- Layout prep (no weight transpose; pads only when needed) ---------
    x2d = x.reshape(m, in_features)
    if (m_pad, k_pad) != (m, in_features):
        x2d = jnp.pad(x2d, ((0, m_pad - m), (0, k_pad - in_features)))

    w2d = weight  # native (N, K) layout
    if (n_pad, k_pad) != (out_features, in_features):
        # TODO(synk): for a fixed layer, pre-pad the parameter once at init
        # time (or size features to tile multiples) to avoid this per-call pad.
        w2d = jnp.pad(w2d, ((0, n_pad - out_features), (0, k_pad - in_features)))

    operands = [x2d, w2d]
    if has_bias:
        b2d = bias.astype(jnp.float32).reshape(1, out_features)
        if n_pad != out_features:
            b2d = jnp.pad(b2d, ((0, 0), (0, n_pad - out_features)))
        operands.append(b2d)

    vmem_needed = footprint(tile_m, tile_n, tile_k)
    vmem_limit = int(min(max(vmem_needed + (8 << 20), 32 << 20),
                         min(vmem_cap - (8 << 20), 112 << 20)))

    if grid_k == 1:
        grid = (grid_m, grid_n)
        in_specs = [
            pl.BlockSpec((tile_m, tile_k), lambda i, j: (i, 0)),
            pl.BlockSpec((tile_n, tile_k), lambda i, j: (j, 0)),
        ]
        if has_bias:
            in_specs.append(pl.BlockSpec((1, tile_n), lambda i, j: (0, j)))
        out_specs = pl.BlockSpec((tile_m, tile_n), lambda i, j: (i, j))
        scratch_shapes = []
        kernel = _single_bias_kernel if has_bias else _single_nobias_kernel
        dims = ("parallel", "parallel")
    else:
        grid = (grid_m, grid_n, grid_k)
        in_specs = [
            pl.BlockSpec((tile_m, tile_k), lambda i, j, k: (i, k)),
            pl.BlockSpec((tile_n, tile_k), lambda i, j, k: (j, k)),
        ]
        if has_bias:
            in_specs.append(pl.BlockSpec((1, tile_n), lambda i, j, k: (0, j)))
        out_specs = pl.BlockSpec((tile_m, tile_n), lambda i, j, k: (i, j))
        scratch_shapes = [pltpu.VMEM((tile_m, tile_n), jnp.float32)]
        kernel = _kacc_bias_kernel if has_bias else _kacc_nobias_kernel
        dims = ("parallel", "parallel", "arbitrary")

    out = pl.pallas_call(
        kernel,
        out_shape=jax.ShapeDtypeStruct((m_pad, n_pad), out_dtype),
        grid_spec=pltpu.PrefetchScalarGridSpec(
            num_scalar_prefetch=0,
            grid=grid,
            in_specs=in_specs,
            out_specs=out_specs,
            scratch_shapes=scratch_shapes,
        ),
        compiler_params=pltpu.CompilerParams(
            dimension_semantics=dims,
            vmem_limit_bytes=vmem_limit,
        ),
    )(*operands)

    out = out[:m, :out_features]
    return out.reshape(*lead_shape, out_features)


def _xavier_normal(key, out_features, in_features, dtype=jnp.float32):
    # torch.nn.init.xavier_normal_: std = gain * sqrt(2 / (fan_in + fan_out))
    std = math.sqrt(2.0 / (in_features + out_features))
    return std * jax.random.normal(key, (out_features, in_features), dtype=dtype)


if __name__ == "__main__":
    # TODO(synk): the real multi-device scatter/reduce collectives of
    # RowParallelLinear are identities at world_size == 1; the model-parallel
    # K reduction is emulated here by the in-kernel K-axis accumulation (no
    # remote DMA is issued).
    batch, seq = 2, 8
    in_features, out_features = 256, 64

    key = jax.random.PRNGKey(0)
    kx, kw = jax.random.split(key)

    x = jax.random.normal(kx, (batch, seq, in_features), dtype=jnp.float32)
    weight = _xavier_normal(kw, out_features, in_features)  # (out, in) Parameter
    bias = jnp.zeros((out_features,), dtype=jnp.float32)    # bias.zero_()

    y_ref = x @ weight.T + bias

    # Path 1: single K step (no accumulator scratch), with bias.
    y = jax.block_until_ready(row_parallel_linear(x, weight, bias))
    assert y.shape == (batch, seq, out_features)
    assert jnp.allclose(y, y_ref, atol=1e-5, rtol=1e-5)

    # Path 2: force the K-partitioned accumulator kernel (emulated
    # reduce_from_model_parallel_region over 2 K slices).
    y2 = jax.block_until_ready(row_parallel_linear(x, weight, bias, tile_k=128))
    assert jnp.allclose(y2, y_ref, atol=1e-5, rtol=1e-5)

    # Path 3: bias-free kernel variant (bias=None in the module).
    y3 = jax.block_until_ready(row_parallel_linear(x, weight, None))
    assert jnp.allclose(y3, x @ weight.T, atol=1e-5, rtol=1e-5)

    print("KERNEL_OK")
</pallas_src>

<mosaic_0001>
module attributes {stable_mosaic.version = 11 : i64} {
  func.func @_single_bias_kernel(%arg0: i32, %arg1: i32, %arg2: memref<8x256xf32, #tpu.memory_space<vmem>>, %arg3: memref<128x256xf32, #tpu.memory_space<vmem>>, %arg4: memref<1x128xf32, #tpu.memory_space<vmem>>, %arg5: memref<8x128xf32, #tpu.memory_space<vmem>>) attributes {dimension_semantics = [#tpu.dimension_semantics<parallel>, #tpu.dimension_semantics<parallel>], iteration_bounds = array<i64: 2, 1>, scalar_prefetch = 0 : i64, scratch_operands = 0 : i64, tpu.core_type = #tpu.core_type<tc>, window_params = [{transform_indices = @transform_0, window_bounds = array<i64: 8, 256>}, {transform_indices = @transform_1, window_bounds = array<i64: 128, 256>}, {transform_indices = @transform_2, window_bounds = array<i64: 1, 128>}, {transform_indices = @transform_3, window_bounds = array<i64: 8, 128>}]} {
    %c0 = arith.constant 0 : index
    %c0_0 = arith.constant 0 : index
    %0 = vector.load %arg2[%c0, %c0_0] : memref<8x256xf32, #tpu.memory_space<vmem>>, vector<8x256xf32>
    %c0_1 = arith.constant 0 : index
    %c0_2 = arith.constant 0 : index
    %1 = vector.load %arg3[%c0_1, %c0_2] : memref<128x256xf32, #tpu.memory_space<vmem>>, vector<128x256xf32>
    %cst = arith.constant dense<0.000000e+00> : vector<8x128xf32>
    %2 = tpu.matmul %0, %1, %cst {dimension_numbers = #tpu.dot_dimension_numbers<[1], [1], [0], [0], [0, 0, 1, 0], [], []>} : vector<8x256xf32>, vector<128x256xf32>, vector<8x128xf32> -> vector<8x128xf32>
    %c0_3 = arith.constant 0 : index
    %c0_4 = arith.constant 0 : index
    %3 = vector.load %arg4[%c0_3, %c0_4] : memref<1x128xf32, #tpu.memory_space<vmem>>, vector<1x128xf32>
    %4 = vector.broadcast %3 : vector<1x128xf32> to vector<8x128xf32>
    %5 = arith.addf %2, %4 : vector<8x128xf32>
    %c0_5 = arith.constant 0 : index
    %c0_6 = arith.constant 0 : index
    %6 = vector.load %arg5[%c0_5, %c0_6] : memref<8x128xf32, #tpu.memory_space<vmem>>, vector<8x128xf32>
    tpu.vector_store %arg5[%c0_5, %c0_6], %5 {strides = array<i32>} : memref<8x128xf32, #tpu.memory_space<vmem>>, vector<8x128xf32>,
    return
  }
  func.func @transform_0(%arg0: i32, %arg1: i32) -> (i32, i32) {
    %c0_i32 = arith.constant 0 : i32
    %c0_i32_0 = arith.constant 0 : i32
    return %arg0, %c0_i32 : i32, i32
  }
  func.func @transform_1(%arg0: i32, %arg1: i32) -> (i32, i32) {
    %c0_i32 = arith.constant 0 : i32
    %c0_i32_0 = arith.constant 0 : i32
    return %arg1, %c0_i32 : i32, i32
  }
  func.func @transform_2(%arg0: i32, %arg1: i32) -> (i32, i32) {
    %c0_i32 = arith.constant 0 : i32
    %c0_i32_0 = arith.constant 0 : i32
    return %c0_i32, %arg1 : i32, i32
  }
  func.func @transform_3(%arg0: i32, %arg1: i32) -> (i32, i32) {
    %c0_i32 = arith.constant 0 : i32
    return %arg0, %arg1 : i32, i32
  }
}

</mosaic_0001>

<llo_original>
// kernel: tpu_custom_call.1
$region0: #{tpu_custom_call.1}
  #allocation0 [shape = 'u32[]', space=smem, size = 0x4, offset = 0x4, fixed_abs, tag = 'smem constant byte address 0x4 - core index']
  #allocation1 [shape = 'u32[144,128]{1,0:T(1,128)}', space=vmem, size = 0x12000, scoped, tag = 'internal scratch']
  %s0 = inlined_call_operand.hbm [shape: f32[16,256], index: 0, kind: input, shape index: {}]
  %s1 = inlined_call_operand.hbm [shape: f32[128,256], index: 1, kind: input, shape index: {}]
  %s2 = inlined_call_operand.vmem [shape: f32[1,128], index: 2, kind: input, shape index: {}]
  %s3 = inlined_call_operand.hbm [shape: f32[16,128], index: 3, kind: output, shape index: {}]
  %s4 = sld [smem:[#allocation0]]
  $region53: #{tpu_custom_call.1} parent=0
    _
  %s6 = ssub.s32 1, %s4
  %s7 = scalar_select 0, %s6, %s4
  $region1: #{tpu_custom_call.1} parent=0
    #allocation2 [shape = 'u8[16384]{0}', space=vmem, size = 0x4000, scoped, tag = 'input window, operand 0']
    #allocation3 [shape = 's32[2]{0}', space=sflag, size = 0x8, scoped, tag = 'scoped memory for tpu_custom_call.1']
    #allocation4 [shape = 's32[2]{0}', space=sflag, size = 0x8, scoped, tag = 'scoped memory for tpu_custom_call.1']
    #allocation5 [shape = 'u8[131072]{0}', space=vmem, size = 0x20000, scoped, tag = 'input window, operand 1, single buffered']
    #allocation6 [shape = 's32[1]{0}', space=sflag, size = 0x4, scoped, tag = 'scoped memory for tpu_custom_call.1']
    #allocation7 [shape = 'u8[8192]{0}', space=vmem, size = 0x2000, scoped, tag = 'output window, operand 0']
    %8 = vsyncpa [#allocation3], 0
    %s9 = scalar_lea.sflag [#allocation3], 1
    %10 = vsyncpa %s9, 0
    %11 = vsyncpa [#allocation6], 0
    %12 = vsyncpa [#allocation4], 0
    %s13 = scalar_lea.sflag [#allocation4], 1
    %14 = vsyncpa %s13, 0
    loop: start=0, step=1, limit=4
    $region2: #{tpu_custom_call.1} parent=1 // loop_pre_header
      _
    $region3: #{tpu_custom_call.1} parent=1 // loop_header
      %s16 = sphi 0, %s20
      %p17 = scmp.ge.s32.totalorder %s16, 4
      %s23 = sphi 0, %s35
      %s24 = sphi 0, %s31
      %s25 = sphi 0, %s23
      %s26 = sphi 0, %s24
      %s27 = sphi 0, %s25
      %s28 = sphi 0, %s26
      %s38 = sphi 0, %s40
      %s41 = sphi 0, %s38
      %s42 = sphi 0, %s41
      %s58 = sphi 0, %s42
      %s64 = sphi 0, %s66
      %s67 = sphi 0, %s64
      %s68 = sphi 0, %s67
      %s84 = sphi 0, %s68
      %s90 = sphi 0, %s92
      %s93 = sphi 0, %s90
      %s94 = sphi 0, %s93
      %s110 = sphi 0, %s94
      %s118 = sphi 0, %s120
      %s121 = sphi 0, %s118
      %s122 = sphi 0, %s121
      %s138 = sphi 0, %s122
    $region4: #{tpu_custom_call.1} parent=1 // loop_header_branch
      %19 = sbr.rel (%p17) target = $region8
    $region5: #{tpu_custom_call.1} parent=1 // loop_body
      %s21 = ssub.s32 %s16, 1
      %s22 = ssub.s32 %s16, 2
      %s29 = sadd.s32 1, %s24
      %p30 = scmp.ge.s32.totalorder %s29, 1
      %s31 = scalar_select %p30, 0, %s29
      %s32 = sadd.s32 1, %s23
      %s33 = scalar_select %p30, %s32, %s23
      %p34 = scmp.ge.s32.totalorder %s33, 2
      %s35 = scalar_select %p34, 0, %s33
      %s36 = ssub.s32 %s23, %s35
      %p37 = scmp.eq.s32.totalorder %s36, 0
      %s39 = sadd.s32 %s38, 1
      %s40 = scalar_select %p37, %s38, %s39
      %p43 = pneg %p37
      %p44 = scmp.eq.s32.totalorder %s16, 1
      %p45 = por %p43, %p44
      %p46 = scmp.ne.s32.totalorder %s38, %s41
      %p47 = scmp.eq.s32.totalorder %s16, 0
      %p48 = por %p46, %p47
      %p49 = scmp.ne.s32.totalorder %s38, %s41
      %p50 = scmp.eq.s32.totalorder %s21, 1
      %p51 = por %p49, %p50
      %p52 = scmp.ne.s32.totalorder %s41, %s42
      %p53 = scmp.eq.s32.totalorder %s21, 0
      %p54 = por %p52, %p53
      %p55 = scmp.ne.s32.totalorder %s41, %s42
      %p56 = scmp.eq.s32.totalorder %s22, 1
      %p57 = por %p55, %p56
      %p59 = scmp.ne.s32.totalorder %s42, %s58
      %p60 = scmp.eq.s32.totalorder %s22, 0
      %p61 = por %p59, %p60
      %s62 = ssub.s32 %s24, %s31
      %p63 = scmp.eq.s32.totalorder %s62, 0
      %s65 = sadd.s32 %s64, 1
      %s66 = scalar_select %p63, %s64, %s65
      %p69 = pneg %p63
      %p70 = scmp.eq.s32.totalorder %s16, 1
      %p71 = por %p69, %p70
      %p72 = scmp.ne.s32.totalorder %s64, %s67
      %p73 = scmp.eq.s32.totalorder %s16, 0
      %p74 = por %p72, %p73
      %p75 = scmp.ne.s32.totalorder %s64, %s67
      %p76 = scmp.eq.s32.totalorder %s21, 1
      %p77 = por %p75, %p76
      %p78 = scmp.ne.s32.totalorder %s67, %s68
      %p79 = scmp.eq.s32.totalorder %s21, 0
      %p80 = por %p78, %p79
      %p81 = scmp.ne.s32.totalorder %s67, %s68
      %p82 = scmp.eq.s32.totalorder %s22, 1
      %p83 = por %p81, %p82
      %p85 = scmp.ne.s32.totalorder %s68, %s84
      %p86 = scmp.eq.s32.totalorder %s22, 0
      %p87 = por %p85, %p86
      %s88 = ssub.s32 %s24, %s31
      %p89 = scmp.eq.s32.totalorder %s88, 0
      %s91 = sadd.s32 %s90, 1
      %s92 = scalar_select %p89, %s90, %s91
      %p95 = pneg %p89
      %p96 = scmp.eq.s32.totalorder %s16, 1
      %p97 = por %p95, %p96
      %p98 = scmp.ne.s32.totalorder %s90, %s93
      %p99 = scmp.eq.s32.totalorder %s16, 0
      %p100 = por %p98, %p99
      %p101 = scmp.ne.s32.totalorder %s90, %s93
      %p102 = scmp.eq.s32.totalorder %s21, 1
      %p103 = por %p101, %p102
      %p104 = scmp.ne.s32.totalorder %s93, %s94
      %p105 = scmp.eq.s32.totalorder %s21, 0
      %p106 = por %p104, %p105
      %p107 = scmp.ne.s32.totalorder %s93, %s94
      %p108 = scmp.eq.s32.totalorder %s22, 1
      %p109 = por %p107, %p108
      %p111 = scmp.ne.s32.totalorder %s94, %s110
      %p112 = scmp.eq.s32.totalorder %s22, 0
      %p113 = por %p111, %p112
      %s114 = ssub.s32 %s23, %s35
      %s115 = ssub.s32 %s24, %s31
      %s116 = sor.u32 %s114, %s115
      %p117 = scmp.eq.s32.totalorder %s116, 0
      %s119 = sadd.s32 %s118, 1
      %s120 = scalar_select %p117, %s118, %s119
      %p123 = pneg %p117
      %p124 = scmp.eq.s32.totalorder %s16, 1
      %p125 = por %p123, %p124
      %p126 = scmp.ne.s32.totalorder %s118, %s121
      %p127 = scmp.eq.s32.totalorder %s16, 0
      %p128 = por %p126, %p127
      %p129 = scmp.ne.s32.totalorder %s118, %s121
      %p130 = scmp.eq.s32.totalorder %s21, 1
      %p131 = por %p129, %p130
      %p132 = scmp.ne.s32.totalorder %s121, %s122
      %p133 = scmp.eq.s32.totalorder %s21, 0
      %p134 = por %p132, %p133
      %p135 = scmp.ne.s32.totalorder %s121, %s122
      %p136 = scmp.eq.s32.totalorder %s22, 1
      %p137 = por %p135, %p136
      %p139 = scmp.ne.s32.totalorder %s122, %s138
      %p140 = scmp.eq.s32.totalorder %s22, 0
      %p141 = por %p139, %p140
      %p142 = scmp.le.s32.totalorder 1, %s16
      %p143 = scmp.lt.s32.totalorder %s16, 3
      %p144 = pnand %p142, %p143
      %p145 = pneg %p144
      // Predicated region
      $region9: #{tpu_custom_call.1} parent=5 // pred_check
        _
      $region10: #{tpu_custom_call.1} parent=5 // pred_check_branch
        %147 = sbr.rel (%p144) target = $region12
      $region11: #{tpu_custom_call.1} parent=5 // pred_region
        %s148 = ssub.s32 %s16, 1
        // Predicated region
        $region13: #{tpu_custom_call.1} parent=11 // pred_check
          %p149 = pneg %p80
        $region14: #{tpu_custom_call.1} parent=11 // pred_check_branch
          %151 = sbr.rel (%p149) target = $region16
        $region15: #{tpu_custom_call.1} parent=11 // pred_region
          %s152 = smul.u32 16, %s26
          %s154 = ssub.s32 4096, 4096
          %155 = vsyncadd [#allocation6], %s154
          %s156 = smul.addr %s152, 2
          %s157 = smul.addr %s156, 128
          %s158 = scalar_lea.hbm %s1, %s157
          %s159 = sshll.u32 [#allocation5], 4
          %s160 = int_to_ptr.vmem [resolvable:$true] %s159
          %165 = dma.hbm_to_vmem [thread:$0]  %s158, 4096, %s160, [#allocation6], 256, 256, 16
        $region16: #{tpu_custom_call.1} parent=11 // pred_fallthru
          _
        // Predicated region
        $region17: #{tpu_custom_call.1} parent=11 // pred_check
          %p166 = pneg %p106
        $region18: #{tpu_custom_call.1} parent=11 // pred_check_branch
          %168 = sbr.rel (%p166) target = $region20
        $region19: #{tpu_custom_call.1} parent=11 // pred_region
          %p169 = scmp.lt.s32.totalorder %s26, 0
          %s170 = scalar_select %p169, %s26, 0
          %s171 = scalar_lea.vmem %s2, %s170
        $region20: #{tpu_custom_call.1} parent=11 // pred_fallthru
          _
      $region12: #{tpu_custom_call.1} parent=5 // pred_fallthru
        _
      %p172 = scmp.lt.s32.totalorder %s16, 2
      // Predicated region
      $region21: #{tpu_custom_call.1} parent=5 // pred_check
        %p173 = pneg %p172
      $region22: #{tpu_custom_call.1} parent=5 // pred_check_branch
        %175 = sbr.rel (%p173) target = $region24
      $region23: #{tpu_custom_call.1} parent=5 // pred_region
        // Predicated region
        $region25: #{tpu_custom_call.1} parent=23 // pred_check
          %p176 = pneg %p48
        $region26: #{tpu_custom_call.1} parent=23 // pred_check_branch
          %178 = sbr.rel (%p176) target = $region28
        $region27: #{tpu_custom_call.1} parent=23 // pred_region
          %s179 = sand.u32 %s38, 1
          %s180 = scalar_lea.sflag [#allocation3], %s179
          %s181 = sand.u32 %s38, 1
          %s182 = smul.addr %s181, 16
          %s183 = scalar_lea.vmem [#allocation2], %s182
          %s185 = ssub.s32 256, 256
          %186 = vsyncadd %s180, %s185
          %s187 = smul.addr %s23, 2
          %s188 = smul.addr %s187, 128
          %s189 = scalar_lea.hbm %s0, %s188
          %s191 = sshll.u32 %s183, 4
          %s192 = int_to_ptr.vmem [resolvable:$true] %s191
          %194 = dma.hbm_to_vmem [thread:$0]  %s189, 256, %s192, %s180
        $region28: #{tpu_custom_call.1} parent=23 // pred_fallthru
          _
      $region24: #{tpu_custom_call.1} parent=5 // pred_fallthru
        _
      %p195 = scmp.le.s32.totalorder 1, %s16
      %p196 = scmp.lt.s32.totalorder %s16, 3
      %p197 = pnand %p195, %p196
      %p198 = pneg %p197
      // Predicated region
      $region29: #{tpu_custom_call.1} parent=5 // pred_check
        _
      $region30: #{tpu_custom_call.1} parent=5 // pred_check_branch
        %200 = sbr.rel (%p197) target = $region32
      $region31: #{tpu_custom_call.1} parent=5 // pred_region
        %s201 = ssub.s32 %s16, 1
        %s202 = sand.u32 %s41, 1
        %s203 = scalar_lea.sflag [#allocation3], %s202
        %s204 = sand.u32 %s41, 1
        %s205 = smul.addr %s204, 16
        %s206 = scalar_lea.vmem [#allocation2], %s205
        // Predicated region
        $region33: #{tpu_custom_call.1} parent=31 // pred_check
          %p207 = pneg %p54
        $region34: #{tpu_custom_call.1} parent=31 // pred_check_branch
          %209 = sbr.rel (%p207) target = $region36
        $region35: #{tpu_custom_call.1} parent=31 // pred_region
          %210 = dma.done %s203, 256
        $region36: #{tpu_custom_call.1} parent=31 // pred_fallthru
          _
        // Predicated region
        $region37: #{tpu_custom_call.1} parent=31 // pred_check
          %p211 = pneg %p80
        $region38: #{tpu_custom_call.1} parent=31 // pred_check_branch
          %213 = sbr.rel (%p211) target = $region40
        $region39: #{tpu_custom_call.1} parent=31 // pred_region
          %214 = dma.done [#allocation6], 4096
        $region40: #{tpu_custom_call.1} parent=31 // pred_fallthru
          _
        %s215 = sand.u32 %s41, 1
        %s216 = scalar_lea.sflag [#allocation3], %s215
        %s217 = sand.u32 %s41, 1
        %s218 = smul.addr %s217, 16
        %s219 = scalar_lea.vmem [#allocation2], %s218
        %p220 = pneg %p54
        %p221 = pneg %p51
        %p222 = pneg %p80
        %p223 = pneg %p77
        %p224 = scmp.lt.s32.totalorder %s26, 0
        %s225 = scalar_select %p224, %s26, 0
        %s226 = scalar_lea.vmem %s2, %s225
        %p227 = pneg %p106
        %p228 = pneg %p103
        %p229 = pneg %p134
        %p230 = pneg %p131
        %s231 = sand.u32 %s121, 1
        %s232 = scalar_lea.sflag [#allocation4], %s231
        %s233 = sand.u32 %s121, 1
        %s234 = smul.addr %s233, 8
        %s235 = scalar_lea.vmem [#allocation7], %s234
        %s236 = smul.u32 16, %s26
        %p237 = scmp.lt.s32.totalorder %s26, 0
        %s238 = scalar_select %p237, %s26, 0
        %s239 = scalar_lea.vmem %s2, %s238
        %v240 = vld [vmem:[%s206] sm:$0xff]
        %v241 = vld [vmem:[%s206 + $0x8] sm:$0xff]
        %v242 = vld [vmem:[#allocation5] sm:$0xff]
        %v243 = vld [vmem:[#allocation5 + $0x8] sm:$0xff]
        %v244 = vld [vmem:[#allocation5 + $0x10] sm:$0xff]
        %v245 = vld [vmem:[#allocation5 + $0x18] sm:$0xff]
        %v246 = vld [vmem:[#allocation5 + $0x20] sm:$0xff]
        %v247 = vld [vmem:[#allocation5 + $0x28] sm:$0xff]
        %v248 = vld [vmem:[#allocation5 + $0x30] sm:$0xff]
        %v249 = vld [vmem:[#allocation5 + $0x38] sm:$0xff]
        %v250 = vld [vmem:[#allocation5 + $0x40] sm:$0xff]
        %v251 = vld [vmem:[#allocation5 + $0x48] sm:$0xff]
        %v252 = vld [vmem:[#allocation5 + $0x50] sm:$0xff]
        %v253 = vld [vmem:[#allocation5 + $0x58] sm:$0xff]
        %v254 = vld [vmem:[#allocation5 + $0x60] sm:$0xff]
        %v255 = vld [vmem:[#allocation5 + $0x68] sm:$0xff]
        %v256 = vld [vmem:[#allocation5 + $0x70] sm:$0xff]
        %v257 = vld [vmem:[#allocation5 + $0x78] sm:$0xff]
        %v258 = vld [vmem:[#allocation5 + $0x80] sm:$0xff]
        %v259 = vld [vmem:[#allocation5 + $0x88] sm:$0xff]
        %v260 = vld [vmem:[#allocation5 + $0x90] sm:$0xff]
        %v261 = vld [vmem:[#allocation5 + $0x98] sm:$0xff]
        %v262 = vld [vmem:[#allocation5 + $0xa0] sm:$0xff]
        %v263 = vld [vmem:[#allocation5 + $0xa8] sm:$0xff]
        %v264 = vld [vmem:[#allocation5 + $0xb0] sm:$0xff]
        %v265 = vld [vmem:[#allocation5 + $0xb8] sm:$0xff]
        %v266 = vld [vmem:[#allocation5 + $0xc0] sm:$0xff]
        %v267 = vld [vmem:[#allocation5 + $0xc8] sm:$0xff]
        %v268 = vld [vmem:[#allocation5 + $0xd0] sm:$0xff]
        %v269 = vld [vmem:[#allocation5 + $0xd8] sm:$0xff]
        %v270 = vld [vmem:[#allocation5 + $0xe0] sm:$0xff]
        %v271 = vld [vmem:[#allocation5 + $0xe8] sm:$0xff]
        %v272 = vld [vmem:[#allocation5 + $0xf0] sm:$0xff]
        %v273 = vld [vmem:[#allocation5 + $0xf8] sm:$0xff]
        %v274 = vld [vmem:[%s239] sm:$0x1]
        %v276 = vlaneseq
        %v277 = vshrl.u32 %v276, 7
        %v278 = vsub.s32 0, %v277
        %v279 = vrot.slane %v274, %v278
        %281 = vmatprep.subr.mxu0 %v243
        %282 = vmatpush1.xpose.msra.mxu0 %v242
        %283 = vmatprep.subr.mxu0 %v245
        %284 = vmatpush1.xpose.msra.mxu0 %v244
        %285 = vmatprep.subr.mxu0 %v247
        %286 = vmatpush1.xpose.msra.mxu0 %v246
        %287 = vmatprep.subr.mxu0 %v249
        %288 = vmatpush1.xpose.msra.mxu0 %v248
        %289 = vmatprep.subr.mxu0 %v251
        %290 = vmatpush1.xpose.msra.mxu0 %v250
        %291 = vmatprep.subr.mxu0 %v253
        %292 = vmatpush1.xpose.msra.mxu0 %v252
        %293 = vmatprep.subr.mxu0 %v255
        %294 = vmatpush1.xpose.msra.mxu0 %v254
        %295 = vmatprep.subr.mxu0 %v257
        %296 = vmatpush1.xpose.msra.mxu0 %v256
        %297 = vmatprep.subr.mxu0 %v259
        %298 = vmatpush1.xpose.msra.mxu0 %v258
        %299 = vmatprep.subr.mxu0 %v261
        %300 = vmatpush1.xpose.msra.mxu0 %v260
        %301 = vmatprep.subr.mxu0 %v263
        %302 = vmatpush1.xpose.msra.mxu0 %v262
        %303 = vmatprep.subr.mxu0 %v265
        %304 = vmatpush1.xpose.msra.mxu0 %v264
        %305 = vmatprep.subr.mxu0 %v267
        %306 = vmatpush1.xpose.msra.mxu0 %v266
        %307 = vmatprep.subr.mxu0 %v269
        %308 = vmatpush1.xpose.msra.mxu0 %v268
        %309 = vmatprep.subr.mxu0 %v271
        %310 = vmatpush1.xpose.msra.mxu0 %v270
        %311 = vmatprep.subr.mxu0 %v273
        %312 = vmatpush1.xpose.msra.mxu0 %v272
        %313 = vmatprep.subr.mxu0 0.0
        %314 = vmatpush1.xpose.msra.mxu0 0.0
        %315 = vmatprep.subr.mxu0 0.0
        %316 = vmatpush1.xpose.msra.mxu0 0.0
        %317 = vmatprep.subr.mxu0 0.0
        %318 = vmatpush1.xpose.msra.mxu0 0.0
        %319 = vmatprep.subr.mxu0 0.0
        %320 = vmatpush1.xpose.msra.mxu0 0.0
        %321 = vmatprep.subr.mxu0 0.0
        %322 = vmatpush1.xpose.msra.mxu0 0.0
        %323 = vmatprep.subr.mxu0 0.0
        %324 = vmatpush1.xpose.msra.mxu0 0.0
        %325 = vmatprep.subr.mxu0 0.0
        %326 = vmatpush1.xpose.msra.mxu0 0.0
        %327 = vmatprep.subr.mxu0 0.0
        %328 = vmatpush1.xpose.msra.mxu0 0.0
        %329 = vmatprep.subr.mxu0 0.0
        %330 = vmatpush1.xpose.msra.mxu0 0.0
        %331 = vmatprep.subr.mxu0 0.0
        %332 = vmatpush1.xpose.msra.mxu0 0.0
        %333 = vmatprep.subr.mxu0 0.0
        %334 = vmatpush1.xpose.msra.mxu0 0.0
        %335 = vmatprep.subr.mxu0 0.0
        %336 = vmatpush1.xpose.msra.mxu0 0.0
        %337 = vmatprep.subr.mxu0 0.0
        %338 = vmatpush1.xpose.msra.mxu0 0.0
        %339 = vmatprep.subr.mxu0 0.0
        %340 = vmatpush1.xpose.msra.mxu0 0.0
        %341 = vmatprep.subr.mxu0 0.0
        %342 = vmatpush1.xpose.msra.mxu0 0.0
        %343 = vmatprep.subr.mxu0 0.0
        %344 = vmatpush1.xpose.msra.mxu0 0.0
        %345 = vmatprep.mubr.f32.mxu0 %v241
        %346 = vmatmul.mubr.f32.gmra.mrb[0].mxu0 %v240
        %v347 = vpop.f32.mrb[0].mxu0
        %v348 = vadd.f32 %v279, %v347
        %v349 = vpop.f32.mrb[0].mxu0
        %350 = vdwg.mxu0
        %351 = vst [vmem:[%s235] sm:$0xff] %v348
        %s352 = sand.u32 %s121, 1
        %s353 = scalar_lea.sflag [#allocation4], %s352
        %s354 = sand.u32 %s121, 1
        %s355 = smul.addr %s354, 8
        %s356 = scalar_lea.vmem [#allocation7], %s355
        // Predicated region
        $region41: #{tpu_custom_call.1} parent=31 // pred_check
          %p357 = pneg %p131
        $region42: #{tpu_custom_call.1} parent=31 // pred_check_branch
          %359 = sbr.rel (%p357) target = $region44
        $region43: #{tpu_custom_call.1} parent=31 // pred_region
          %s361 = ssub.s32 128, 128
          %362 = vsyncadd %s353, %s361
          %s363 = sadd.s32 %s26, %s25
          %s364 = smul.addr %s363, 128
          %s365 = scalar_lea.hbm %s3, %s364
          %s367 = sshll.u32 %s356, 4
          %s368 = int_to_ptr.vmem [resolvable:$true] %s367
          %370 = dma.vmem_to_hbm [thread:$0]  %s368, 128, %s365, %s353
        $region44: #{tpu_custom_call.1} parent=31 // pred_fallthru
          _
      $region32: #{tpu_custom_call.1} parent=5 // pred_fallthru
        _
      %p371 = scmp.le.s32.totalorder 2, %s16
      // Predicated region
      $region45: #{tpu_custom_call.1} parent=5 // pred_check
        %p372 = pneg %p371
      $region46: #{tpu_custom_call.1} parent=5 // pred_check_branch
        %374 = sbr.rel (%p372) target = $region48
      $region47: #{tpu_custom_call.1} parent=5 // pred_region
        %s375 = ssub.s32 %s16, 2
        // Predicated region
        $region49: #{tpu_custom_call.1} parent=47 // pred_check
          %p376 = pneg %p137
        $region50: #{tpu_custom_call.1} parent=47 // pred_check_branch
          %378 = sbr.rel (%p376) target = $region52
        $region51: #{tpu_custom_call.1} parent=47 // pred_region
          %s379 = sand.u32 %s122, 1
          %s380 = scalar_lea.sflag [#allocation4], %s379
          %s381 = sand.u32 %s122, 1
          %s382 = smul.addr %s381, 8
          %s383 = scalar_lea.vmem [#allocation7], %s382
          %384 = dma.done %s380, 128
        $region52: #{tpu_custom_call.1} parent=47 // pred_fallthru
          _
      $region48: #{tpu_custom_call.1} parent=5 // pred_fallthru
        _
    $region6: #{tpu_custom_call.1} parent=1 // loop_footer
      %s20 = sadd.s32 1, %s16
    $region7: #{tpu_custom_call.1} parent=1 // loop_footer_branch
      %15 = sbr.rel target = $region3
    $region8: #{tpu_custom_call.1} parent=1 // loop_exit
      _
    %385 = vsyncpa [#allocation3], 1
    %s386 = scalar_lea.sflag [#allocation3], 1
    %387 = vsyncpa %s386, 1
    %388 = vsyncpa [#allocation6], 1
    %389 = vsyncpa [#allocation4], 1
    %s390 = scalar_lea.sflag [#allocation4], 1
    %391 = vsyncpa %s390, 1

</llo_original>
